<compile_context>
chip_gen: v6e
topology: v6e:2x2x1
jax: 0.10.0
libtpu: 0.0.40
codegen_flags: <defaults>
</compile_context>

<pallas_src>
import functools

import jax
import jax.numpy as jnp
from jax.experimental import pallas as pl
from jax.experimental.pallas import tpu as pltpu

_LANE = 128      # lane width: pad all feature dims to a multiple of this
_SUBLANE = 8     # sublane count: pad batch to a multiple of this


def _round_up(x, m):
    return ((x + m - 1) // m) * m


def _fused_mlp_kernel(*refs, n_layers):
    """refs = (x_ref, w0_ref, b0_ref, w1_ref, b1_ref, ..., o_ref).

    Computes out = relu(... relu(relu(x @ w0 + b0) @ w1 + b1) ...) entirely
    in VMEM/vregs; only the final activation is stored.
    """
    x_ref = refs[0]
    o_ref = refs[-1]
    layer_refs = refs[1:-1]

    out = x_ref[...]
    for l in range(n_layers):
        w_ref = layer_refs[2 * l]
        b_ref = layer_refs[2 * l + 1]
        # MXU matmul with f32 accumulation; bias-add + ReLU ride on the VPU.
        y = jnp.dot(out, w_ref[...], preferred_element_type=jnp.float32)
        y = y + b_ref[...]                     # broadcast [1, Dout] over batch
        out = jnp.maximum(y, 0.0)              # ReLU (also default last_activation)
    o_ref[...] = out.astype(o_ref.dtype)


def mlp_base_forward(x, params):
    """Reproduces MLPBase.forward:
         for fc in fcs[:-1]: out = relu(fc(out))
         out = last_activation(fcs[-1](out))   # default last_activation == relu
    as a single fused Pallas kernel with lane-dense padded operands.
    """
    B, d_in = x.shape
    n_layers = len(params)
    dims = [d_in] + [w.shape[1] for (w, _) in params]

    # Padded (lane/sublane aligned) shapes.
    Bp = _round_up(B, _SUBLANE)
    dims_p = [_round_up(d, _LANE) for d in dims]

    # Zero-pad input and parameters.  Zero padding is exact: padded input
    # columns hit zero weight rows, and padded output columns are
    # ReLU(0 + 0) == 0 so they contribute nothing downstream.
    x_p = jnp.zeros((Bp, dims_p[0]), x.dtype).at[:B, :d_in].set(x)

    padded_params = []
    for l, (w, b) in enumerate(params):
        din, dout = w.shape
        w_p = jnp.zeros((dims_p[l], dims_p[l + 1]), w.dtype).at[:din, :dout].set(w)
        b2 = b.reshape(1, -1)
        b_p = jnp.zeros((1, dims_p[l + 1]), b.dtype).at[:, :dout].set(b2)
        padded_params += [w_p, b_p]

    kernel = functools.partial(_fused_mlp_kernel, n_layers=n_layers)
    n_inputs = 1 + 2 * n_layers

    out_p = pl.pallas_call(
        kernel,
        out_shape=jax.ShapeDtypeStruct((Bp, dims_p[-1]), x.dtype),
        in_specs=[pl.BlockSpec(memory_space=pltpu.MemorySpace.VMEM)
                  for _ in range(n_inputs)],
        out_specs=pl.BlockSpec(memory_space=pltpu.MemorySpace.VMEM),
    )(x_p, *padded_params)

    # Slice padding back off outside the kernel.
    return out_p[:B, :dims[-1]]


def init_mlp_params(key, input_dim, hidden_shapes, dtype=jnp.float32):
    """Deterministic fan-in uniform init mimicking nn.Linear defaults.
    Weights stored as [in, out], bias as [1, out]."""
    params = []
    in_dim = input_dim
    for h in hidden_shapes:
        key, kw, kb = jax.random.split(key, 3)
        bound = 1.0 / jnp.sqrt(jnp.asarray(in_dim, dtype))
        w = jax.random.uniform(kw, (in_dim, h), dtype, minval=-bound, maxval=bound)
        b = jax.random.uniform(kb, (1, h), dtype, minval=-bound, maxval=bound)
        params.append((w, b))
        in_dim = h
    return params


def mlp_base_reference(x, params):
    out = x
    for (w, b) in params:
        out = jnp.maximum(out @ w + b, 0.0)
    return out


if __name__ == "__main__":
    key = jax.random.PRNGKey(0)
    batch = 8
    input_dim = 32
    hidden_shapes = [64, 32]

    key, kx, kp = jax.random.split(key, 3)
    x = jax.random.normal(kx, (batch, input_dim), jnp.float32)
    params = init_mlp_params(kp, input_dim, hidden_shapes)

    fwd = jax.jit(mlp_base_forward)
    out = fwd(x, params)
    out = jax.block_until_ready(out)

    ref = mlp_base_reference(x, params)
    assert out.shape == (batch, hidden_shapes[-1]), out.shape
    assert jnp.allclose(out, ref, atol=1e-5, rtol=1e-5), "mismatch vs reference"

    print("KERNEL_OK")
</pallas_src>

<mosaic_0001>
module attributes {stable_mosaic.version = 11 : i64} {
  func.func @_fused_mlp_kernel(%arg0: memref<8x128xf32, #tpu.memory_space<vmem>>, %arg1: memref<128x128xf32, #tpu.memory_space<vmem>>, %arg2: memref<1x128xf32, #tpu.memory_space<vmem>>, %arg3: memref<128x128xf32, #tpu.memory_space<vmem>>, %arg4: memref<1x128xf32, #tpu.memory_space<vmem>>, %arg5: memref<8x128xf32, #tpu.memory_space<vmem>>) attributes {dimension_semantics = [], scalar_prefetch = 0 : i64, scratch_operands = 0 : i64, tpu.core_type = #tpu.core_type<tc>} {
    %c0 = arith.constant 0 : index
    %c0_0 = arith.constant 0 : index
    %0 = vector.load %arg0[%c0, %c0_0] : memref<8x128xf32, #tpu.memory_space<vmem>>, vector<8x128xf32>
    %c0_1 = arith.constant 0 : index
    %c0_2 = arith.constant 0 : index
    %1 = vector.load %arg1[%c0_1, %c0_2] : memref<128x128xf32, #tpu.memory_space<vmem>>, vector<128x128xf32>
    %cst = arith.constant dense<0.000000e+00> : vector<8x128xf32>
    %2 = tpu.matmul %0, %1, %cst {dimension_numbers = #tpu.dot_dimension_numbers<[1], [0], [0], [1], [0, 0, 1, 1], [], []>} : vector<8x128xf32>, vector<128x128xf32>, vector<8x128xf32> -> vector<8x128xf32>
    %c0_3 = arith.constant 0 : index
    %c0_4 = arith.constant 0 : index
    %3 = vector.load %arg2[%c0_3, %c0_4] : memref<1x128xf32, #tpu.memory_space<vmem>>, vector<1x128xf32>
    %4 = vector.broadcast %3 : vector<1x128xf32> to vector<8x128xf32>
    %5 = arith.addf %2, %4 : vector<8x128xf32>
    %cst_5 = arith.constant 0.000000e+00 : f32
    %6 = vector.broadcast %cst_5 : f32 to vector<8x128xf32>
    %7 = arith.maximumf %5, %6 : vector<8x128xf32>
    %c0_6 = arith.constant 0 : index
    %c0_7 = arith.constant 0 : index
    %8 = vector.load %arg3[%c0_6, %c0_7] : memref<128x128xf32, #tpu.memory_space<vmem>>, vector<128x128xf32>
    %cst_8 = arith.constant dense<0.000000e+00> : vector<8x128xf32>
    %9 = tpu.matmul %7, %8, %cst_8 {dimension_numbers = #tpu.dot_dimension_numbers<[1], [0], [0], [1], [0, 0, 1, 1], [], []>} : vector<8x128xf32>, vector<128x128xf32>, vector<8x128xf32> -> vector<8x128xf32>
    %c0_9 = arith.constant 0 : index
    %c0_10 = arith.constant 0 : index
    %10 = vector.load %arg4[%c0_9, %c0_10] : memref<1x128xf32, #tpu.memory_space<vmem>>, vector<1x128xf32>
    %11 = vector.broadcast %10 : vector<1x128xf32> to vector<8x128xf32>
    %12 = arith.addf %9, %11 : vector<8x128xf32>
    %cst_11 = arith.constant 0.000000e+00 : f32
    %13 = vector.broadcast %cst_11 : f32 to vector<8x128xf32>
    %14 = arith.maximumf %12, %13 : vector<8x128xf32>
    %c0_12 = arith.constant 0 : index
    %c0_13 = arith.constant 0 : index
    %15 = vector.load %arg5[%c0_12, %c0_13] : memref<8x128xf32, #tpu.memory_space<vmem>>, vector<8x128xf32>
    tpu.vector_store %arg5[%c0_12, %c0_13], %14 {strides = array<i32>} : memref<8x128xf32, #tpu.memory_space<vmem>>, vector<8x128xf32>,
    return
  }
}

</mosaic_0001>

<llo_original>
// kernel: mlp_base_forward.1
$region0: #{mlp_base_forward.1}
  #allocation0 [shape = 'u32[]', space=smem, size = 0x4, offset = 0x4, fixed_abs, tag = 'smem constant byte address 0x4 - core index']
  #allocation1 [shape = 'u32[144,128]{1,0:T(1,128)}', space=vmem, size = 0x12000, scoped, tag = 'internal scratch']
  %s0 = inlined_call_operand.vmem [shape: f32[8,128], index: 0, kind: input, shape index: {}]
  %s1 = inlined_call_operand.vmem [shape: f32[128,128], index: 1, kind: input, shape index: {}]
  %s2 = inlined_call_operand.vmem [shape: f32[1,128], index: 2, kind: input, shape index: {}]
  %s3 = inlined_call_operand.vmem [shape: f32[128,128], index: 3, kind: input, shape index: {}]
  %s4 = inlined_call_operand.vmem [shape: f32[1,128], index: 4, kind: input, shape index: {}]
  %s5 = inlined_call_operand.hbm [shape: f32[8,128], index: 5, kind: output, shape index: {}]
  %s6 = sld [smem:[#allocation0]]
  $region30: #{mlp_base_forward.1} parent=0
    _
  %s8 = ssub.s32 1, %s6
  %s9 = scalar_select 0, %s8, %s6
  $region1: #{mlp_base_forward.1} parent=0
    #allocation2 [shape = 'u8[4096]{0}', space=vmem, size = 0x1000, scoped, tag = 'output window, operand 0, single buffered']
    #allocation3 [shape = 's32[1]{0}', space=sflag, size = 0x4, scoped, tag = 'scoped memory for mlp_base_forward.1']
    %10 = vsyncpa [#allocation3], 0
    // Predicated region
    $region2: #{mlp_base_forward.1} parent=1 // pred_check
      _
    $region3: #{mlp_base_forward.1} parent=1 // pred_check_branch
      %12 = sbr.rel (0) target = $region5
    $region4: #{mlp_base_forward.1} parent=1 // pred_region
      _
    $region5: #{mlp_base_forward.1} parent=1 // pred_fallthru
      _
    // Predicated region
    $region6: #{mlp_base_forward.1} parent=1 // pred_check
      _
    $region7: #{mlp_base_forward.1} parent=1 // pred_check_branch
      %14 = sbr.rel (0) target = $region9
    $region8: #{mlp_base_forward.1} parent=1 // pred_region
      _
    $region9: #{mlp_base_forward.1} parent=1 // pred_fallthru
      _
    // Predicated region
    $region10: #{mlp_base_forward.1} parent=1 // pred_check
      _
    $region11: #{mlp_base_forward.1} parent=1 // pred_check_branch
      %16 = sbr.rel (0) target = $region13
    $region12: #{mlp_base_forward.1} parent=1 // pred_region
      _
    $region13: #{mlp_base_forward.1} parent=1 // pred_fallthru
      _
    // Predicated region
    $region14: #{mlp_base_forward.1} parent=1 // pred_check
      _
    $region15: #{mlp_base_forward.1} parent=1 // pred_check_branch
      %18 = sbr.rel (0) target = $region17
    $region16: #{mlp_base_forward.1} parent=1 // pred_region
      _
    $region17: #{mlp_base_forward.1} parent=1 // pred_fallthru
      _
    // Predicated region
    $region18: #{mlp_base_forward.1} parent=1 // pred_check
      _
    $region19: #{mlp_base_forward.1} parent=1 // pred_check_branch
      %20 = sbr.rel (0) target = $region21
    $region20: #{mlp_base_forward.1} parent=1 // pred_region
      _
    $region21: #{mlp_base_forward.1} parent=1 // pred_fallthru
      _
    %v21 = vld [vmem:[%s0] sm:$0xff]
    %v22 = vld [vmem:[%s1] sm:$0xff]
    %v23 = vld [vmem:[%s1 + $0x8] sm:$0xff]
    %v24 = vld [vmem:[%s1 + $0x10] sm:$0xff]
    %v25 = vld [vmem:[%s1 + $0x18] sm:$0xff]
    %v26 = vld [vmem:[%s1 + $0x20] sm:$0xff]
    %v27 = vld [vmem:[%s1 + $0x28] sm:$0xff]
    %v28 = vld [vmem:[%s1 + $0x30] sm:$0xff]
    %v29 = vld [vmem:[%s1 + $0x38] sm:$0xff]
    %v30 = vld [vmem:[%s1 + $0x40] sm:$0xff]
    %v31 = vld [vmem:[%s1 + $0x48] sm:$0xff]
    %v32 = vld [vmem:[%s1 + $0x50] sm:$0xff]
    %v33 = vld [vmem:[%s1 + $0x58] sm:$0xff]
    %v34 = vld [vmem:[%s1 + $0x60] sm:$0xff]
    %v35 = vld [vmem:[%s1 + $0x68] sm:$0xff]
    %v36 = vld [vmem:[%s1 + $0x70] sm:$0xff]
    %v37 = vld [vmem:[%s1 + $0x78] sm:$0xff]
    %v38 = vld [vmem:[%s2] sm:$0x1]
    %v40 = vlaneseq
    %v41 = vshrl.u32 %v40, 7
    %v42 = vsub.s32 0, %v41
    %v43 = vrot.slane %v38, %v42
    %45 = vmatprep.subr.mxu0 0.0
    %46 = vmatpush1.msra.mxu0 %v37
    %47 = vmatprep.subr.mxu0 0.0
    %48 = vmatpush1.msra.mxu0 %v36
    %49 = vmatprep.subr.mxu0 0.0
    %50 = vmatpush1.msra.mxu0 %v35
    %51 = vmatprep.subr.mxu0 0.0
    %52 = vmatpush1.msra.mxu0 %v34
    %53 = vmatprep.subr.mxu0 0.0
    %54 = vmatpush1.msra.mxu0 %v33
    %55 = vmatprep.subr.mxu0 0.0
    %56 = vmatpush1.msra.mxu0 %v32
    %57 = vmatprep.subr.mxu0 0.0
    %58 = vmatpush1.msra.mxu0 %v31
    %59 = vmatprep.subr.mxu0 0.0
    %60 = vmatpush1.msra.mxu0 %v30
    %61 = vmatprep.subr.mxu0 0.0
    %62 = vmatpush1.msra.mxu0 %v29
    %63 = vmatprep.subr.mxu0 0.0
    %64 = vmatpush1.msra.mxu0 %v28
    %65 = vmatprep.subr.mxu0 0.0
    %66 = vmatpush1.msra.mxu0 %v27
    %67 = vmatprep.subr.mxu0 0.0
    %68 = vmatpush1.msra.mxu0 %v26
    %69 = vmatprep.subr.mxu0 0.0
    %70 = vmatpush1.msra.mxu0 %v25
    %71 = vmatprep.subr.mxu0 0.0
    %72 = vmatpush1.msra.mxu0 %v24
    %73 = vmatprep.subr.mxu0 0.0
    %74 = vmatpush1.msra.mxu0 %v23
    %75 = vmatprep.subr.mxu0 0.0
    %76 = vmatpush1.msra.mxu0 %v22
    %77 = vmatprep.subr.mxu0 0.0
    %78 = vmatpush2.msra.mxu0 0.0
    %79 = vmatprep.subr.mxu0 0.0
    %80 = vmatpush2.msra.mxu0 0.0
    %81 = vmatprep.subr.mxu0 0.0
    %82 = vmatpush2.msra.mxu0 0.0
    %83 = vmatprep.subr.mxu0 0.0
    %84 = vmatpush2.msra.mxu0 0.0
    %85 = vmatprep.subr.mxu0 0.0
    %86 = vmatpush2.msra.mxu0 0.0
    %87 = vmatprep.subr.mxu0 0.0
    %88 = vmatpush2.msra.mxu0 0.0
    %89 = vmatprep.subr.mxu0 0.0
    %90 = vmatpush2.msra.mxu0 0.0
    %91 = vmatprep.subr.mxu0 0.0
    %92 = vmatpush2.msra.mxu0 0.0
    %93 = vmatprep.subr.mxu0 0.0
    %94 = vmatpush2.msra.mxu0 0.0
    %95 = vmatprep.subr.mxu0 0.0
    %96 = vmatpush2.msra.mxu0 0.0
    %97 = vmatprep.subr.mxu0 0.0
    %98 = vmatpush2.msra.mxu0 0.0
    %99 = vmatprep.subr.mxu0 0.0
    %100 = vmatpush2.msra.mxu0 0.0
    %101 = vmatprep.subr.mxu0 0.0
    %102 = vmatpush2.msra.mxu0 0.0
    %103 = vmatprep.subr.mxu0 0.0
    %104 = vmatpush2.msra.mxu0 0.0
    %105 = vmatprep.subr.mxu0 0.0
    %106 = vmatpush2.msra.mxu0 0.0
    %107 = vmatprep.subr.mxu0 0.0
    %108 = vmatpush2.msra.mxu0 0.0
    %109 = vmatprep.mubr.f32.mxu0 0.0
    %110 = vmatmul.mubr.f32.gmra.mxu0 %v21
    %v111 = vpop.f32.mrf.mxu0
    %v112 = vadd.f32 %v43, %v111
    %v113 = vpop.f32.mrf.mxu0
    %114 = vdwg.mxu0
    %v115 = vmax.f32 %v112, 0.0
    %v116 = vld [vmem:[%s3] sm:$0xff]
    %v117 = vld [vmem:[%s3 + $0x8] sm:$0xff]
    %v118 = vld [vmem:[%s3 + $0x10] sm:$0xff]
    %v119 = vld [vmem:[%s3 + $0x18] sm:$0xff]
    %v120 = vld [vmem:[%s3 + $0x20] sm:$0xff]
    %v121 = vld [vmem:[%s3 + $0x28] sm:$0xff]
    %v122 = vld [vmem:[%s3 + $0x30] sm:$0xff]
    %v123 = vld [vmem:[%s3 + $0x38] sm:$0xff]
    %v124 = vld [vmem:[%s3 + $0x40] sm:$0xff]
    %v125 = vld [vmem:[%s3 + $0x48] sm:$0xff]
    %v126 = vld [vmem:[%s3 + $0x50] sm:$0xff]
    %v127 = vld [vmem:[%s3 + $0x58] sm:$0xff]
    %v128 = vld [vmem:[%s3 + $0x60] sm:$0xff]
    %v129 = vld [vmem:[%s3 + $0x68] sm:$0xff]
    %v130 = vld [vmem:[%s3 + $0x70] sm:$0xff]
    %v131 = vld [vmem:[%s3 + $0x78] sm:$0xff]
    %v132 = vld [vmem:[%s4] sm:$0x1]
    %v134 = vlaneseq
    %v135 = vshrl.u32 %v134, 7
    %v136 = vsub.s32 0, %v135
    %v137 = vrot.slane %v132, %v136
    %139 = vmatprep.subr.mxu0 0.0
    %140 = vmatpush1.msra.mxu0 %v131
    %141 = vmatprep.subr.mxu0 0.0
    %142 = vmatpush1.msra.mxu0 %v130
    %143 = vmatprep.subr.mxu0 0.0
    %144 = vmatpush1.msra.mxu0 %v129
    %145 = vmatprep.subr.mxu0 0.0
    %146 = vmatpush1.msra.mxu0 %v128
    %147 = vmatprep.subr.mxu0 0.0
    %148 = vmatpush1.msra.mxu0 %v127
    %149 = vmatprep.subr.mxu0 0.0
    %150 = vmatpush1.msra.mxu0 %v126
    %151 = vmatprep.subr.mxu0 0.0
    %152 = vmatpush1.msra.mxu0 %v125
    %153 = vmatprep.subr.mxu0 0.0
    %154 = vmatpush1.msra.mxu0 %v124
    %155 = vmatprep.subr.mxu0 0.0
    %156 = vmatpush1.msra.mxu0 %v123
    %157 = vmatprep.subr.mxu0 0.0
    %158 = vmatpush1.msra.mxu0 %v122
    %159 = vmatprep.subr.mxu0 0.0
    %160 = vmatpush1.msra.mxu0 %v121
    %161 = vmatprep.subr.mxu0 0.0
    %162 = vmatpush1.msra.mxu0 %v120
    %163 = vmatprep.subr.mxu0 0.0
    %164 = vmatpush1.msra.mxu0 %v119
    %165 = vmatprep.subr.mxu0 0.0
    %166 = vmatpush1.msra.mxu0 %v118
    %167 = vmatprep.subr.mxu0 0.0
    %168 = vmatpush1.msra.mxu0 %v117
    %169 = vmatprep.subr.mxu0 0.0
    %170 = vmatpush1.msra.mxu0 %v116
    %171 = vmatprep.subr.mxu0 0.0
    %172 = vmatpush2.msra.mxu0 0.0
    %173 = vmatprep.subr.mxu0 0.0
    %174 = vmatpush2.msra.mxu0 0.0
    %175 = vmatprep.subr.mxu0 0.0
    %176 = vmatpush2.msra.mxu0 0.0
    %177 = vmatprep.subr.mxu0 0.0
    %178 = vmatpush2.msra.mxu0 0.0
    %179 = vmatprep.subr.mxu0 0.0
    %180 = vmatpush2.msra.mxu0 0.0
    %181 = vmatprep.subr.mxu0 0.0
    %182 = vmatpush2.msra.mxu0 0.0
    %183 = vmatprep.subr.mxu0 0.0
    %184 = vmatpush2.msra.mxu0 0.0
    %185 = vmatprep.subr.mxu0 0.0
    %186 = vmatpush2.msra.mxu0 0.0
    %187 = vmatprep.subr.mxu0 0.0
    %188 = vmatpush2.msra.mxu0 0.0
    %189 = vmatprep.subr.mxu0 0.0
    %190 = vmatpush2.msra.mxu0 0.0
    %191 = vmatprep.subr.mxu0 0.0
    %192 = vmatpush2.msra.mxu0 0.0
    %193 = vmatprep.subr.mxu0 0.0
    %194 = vmatpush2.msra.mxu0 0.0
    %195 = vmatprep.subr.mxu0 0.0
    %196 = vmatpush2.msra.mxu0 0.0
    %197 = vmatprep.subr.mxu0 0.0
    %198 = vmatpush2.msra.mxu0 0.0
    %199 = vmatprep.subr.mxu0 0.0
    %200 = vmatpush2.msra.mxu0 0.0
    %201 = vmatprep.subr.mxu0 0.0
    %202 = vmatpush2.msra.mxu0 0.0
    %203 = vmatprep.mubr.f32.mxu0 0.0
    %204 = vmatmul.mubr.f32.gmra.mxu0 %v115
    %v205 = vpop.f32.mrf.mxu0
    %v206 = vadd.f32 %v137, %v205
    %v207 = vpop.f32.mrf.mxu0
    %208 = vdwg.mxu0
    %v209 = vmax.f32 %v206, 0.0
    %210 = vst [vmem:[#allocation2] sm:$0xff] %v209
    // Predicated region
    $region22: #{mlp_base_forward.1} parent=1 // pred_check
      _
    $region23: #{mlp_base_forward.1} parent=1 // pred_check_branch
      %212 = sbr.rel (0) target = $region25
    $region24: #{mlp_base_forward.1} parent=1 // pred_region
      %s214 = ssub.s32 128, 128
      %215 = vsyncadd [#allocation3], %s214
      %s217 = sshll.u32 [#allocation2], 4
      %s218 = int_to_ptr.vmem [resolvable:$true] %s217
      %220 = dma.vmem_to_hbm [thread:$0]  %s218, 128, %s5, [#allocation3]
    $region25: #{mlp_base_forward.1} parent=1 // pred_fallthru
      _
    // Predicated region
    $region26: #{mlp_base_forward.1} parent=1 // pred_check
      _
    $region27: #{mlp_base_forward.1} parent=1 // pred_check_branch
      %222 = sbr.rel (0) target = $region29
    $region28: #{mlp_base_forward.1} parent=1 // pred_region
      %223 = dma.done [#allocation3], 128
    $region29: #{mlp_base_forward.1} parent=1 // pred_fallthru
      _
    %224 = vsyncpa [#allocation3], 1

</llo_original>
